<compile_context>
chip_gen: v5e
topology: v5e:2x2
jax: 0.10.0
libtpu: 0.0.40
codegen_flags: <defaults>
</compile_context>

<pallas_src>
import functools

import jax
import jax.numpy as jnp
from jax.experimental import pallas as pl
from jax.experimental.pallas import tpu as pltpu

LANE = 128


# ---------------------------------------------------------------------------
# Fused single-pass kernel (default): one batch's full (C, T) slab in VMEM.
# ---------------------------------------------------------------------------
def se_fused_kernel(x_ref, w1_ref, b1_ref, w2_ref, b2_ref, o_ref, *, inv_t):
    """x_ref/o_ref: (1, C, T) full-T blocks. w1:(Bn,C) b1:(Bn,1) w2:(C,Bn) b2:(C,1)."""
    x = x_ref[0]                                                        # (C, T), storage dtype
    # Mean over the full T, accumulated in f32 (cast is exact for bf16 inputs).
    pooled = jnp.sum(x.astype(jnp.float32), axis=-1, keepdims=True) * inv_t   # (C, 1)
    # Conv1d(C->Bn, k=1) + ReLU, then Conv1d(Bn->C, k=1) + Sigmoid.
    # PyTorch weight layout used directly (no transposes), all in f32.
    h = jnp.dot(w1_ref[...], pooled, preferred_element_type=jnp.float32) + b1_ref[...]
    h = jnp.maximum(h, 0.0)                                             # (Bn, 1)
    z = jnp.dot(w2_ref[...], h, preferred_element_type=jnp.float32) + b2_ref[...]
    s = jax.nn.sigmoid(z)                                               # (C, 1) f32
    # Apply the scale in f32, cast to the storage dtype once at the store.
    o_ref[0] = (x.astype(jnp.float32) * s).astype(o_ref.dtype)


# ---------------------------------------------------------------------------
# Two-pass fallback (per-batch slab too large for VMEM).
# ---------------------------------------------------------------------------
def se_reduce_kernel(x_ref, pooled_ref, acc_ref, *, true_t, t_tile, inv_t):
    """Pass 1: sum x over T into a lane-wide (C, 128) accumulator.

    x_ref:      (1, C, tT) block (last T tile may be ragged -> iota-masked)
    pooled_ref: (1, C, 1)  f32 output (mean over the TRUE T)
    acc_ref:    (C, 128)   f32 VMEM scratch
    """
    t = pl.program_id(1)

    @pl.when(t == 0)
    def _():
        acc_ref[...] = jnp.zeros_like(acc_ref)

    xt = x_ref[0]                                                       # (C, tT)
    base = t * t_tile
    # Hoisted iota (JAX does not CSE broadcast_in_dim inside the loop).
    lane_idx = jax.lax.broadcasted_iota(jnp.int32, (x_ref.shape[1], LANE), 1)

    # Per tile: only tT/128 VPU adds into the (C, 128) accumulator; the
    # cross-lane (XLU) reduce happens once in the epilogue below.
    acc = acc_ref[...]
    for g in range(t_tile // LANE):                                     # static, unrolled
        chunk = xt[:, g * LANE:(g + 1) * LANE].astype(jnp.float32)      # (C, 128)
        # Mask the ragged tail against the true T: out-of-bounds lanes of an
        # edge block are unspecified, NOT zero.
        valid = (lane_idx + (base + g * LANE)) < true_t
        acc = acc + jnp.where(valid, chunk, 0.0)
    acc_ref[...] = acc

    @pl.when(t == pl.num_programs(1) - 1)
    def _():
        # Single cross-lane reduce + mean over the TRUE (unmasked) T.
        pooled_ref[0] = jnp.sum(acc_ref[...], axis=-1, keepdims=True) * inv_t


def se_scale_kernel(s_ref, x_ref, o_ref):
    """Pass 2: out = x * s for one lane-dense (1, C, tT) block (scale in f32)."""
    s = s_ref[0]                                                        # (C, 1), f32
    o_ref[0] = (x_ref[0].astype(jnp.float32) * s).astype(o_ref.dtype)


# ---------------------------------------------------------------------------
# Wrapper
# ---------------------------------------------------------------------------
def _pick_vmem_limit_bytes():
    """Scoped-VMEM budget per generation: ~64 MiB when physical VMEM is 128 MiB
    (v5e/v6e), ~48 MiB when it is 64 MiB (v7x). Falls back conservatively."""
    try:
        phys = pltpu.get_tpu_info().vmem_capacity_bytes
    except Exception:
        phys = 64 * 1024 * 1024  # conservative (v7x-sized) default
    if phys >= 128 * 1024 * 1024:
        return 64 * 1024 * 1024
    return 48 * 1024 * 1024


def se_module(x, w1, b1, w2, b2, *, t_tile=None, vmem_limit_bytes=None,
              donate_x=False, force_two_pass=False):
    """SEModule forward.

    x : (B, C, T)   w1: (Bn, C)   b1: (Bn,)   w2: (C, Bn)   b2: (C,)
    Returns (B, C, T) in x.dtype.  Set donate_x=True only if the caller donates
    x's buffer (enables input_output_aliases).
    """
    B, C, T = x.shape
    Bn = w1.shape[0]
    itemsize = jnp.dtype(x.dtype).itemsize
    if vmem_limit_bytes is None:
        vmem_limit_bytes = _pick_vmem_limit_bytes()

    # Column-vector / f32 layouts for the tiny SE parameters.
    w1f = w1.astype(jnp.float32)
    w2f = w2.astype(jnp.float32)
    b1f = b1.astype(jnp.float32)
    b2f = b2.astype(jnp.float32)

    # ---- fused-path VMEM footprint per grid step ----------------------------
    # Double-buffered input + output slabs, a (conservative) f32 working copy,
    # and the constant weight blocks. The weight index maps are constant so
    # they are DMA'd only once, but the pipeline still allocates 2 buffers for
    # them (pl.Buffered(1) would halve that; not used, to stay conservative).
    weight_bytes = 2 * (2 * Bn * C + Bn + C) * 4
    fused_bytes = 4 * C * T * itemsize + C * T * 4 + weight_bytes
    use_fused = (not force_two_pass) and fused_bytes <= int(0.9 * vmem_limit_bytes)

    if use_fused:
        out = pl.pallas_call(
            functools.partial(se_fused_kernel, inv_t=1.0 / float(T)),
            out_shape=jax.ShapeDtypeStruct((B, C, T), x.dtype),
            grid=(B,),
            in_specs=[
                pl.BlockSpec((1, C, T), lambda b: (b, 0, 0)),      # full (C, T) slab
                pl.BlockSpec((Bn, C), lambda b: (0, 0)),           # constant -> DMA'd once
                pl.BlockSpec((Bn, 1), lambda b: (0, 0)),
                pl.BlockSpec((C, Bn), lambda b: (0, 0)),
                pl.BlockSpec((C, 1), lambda b: (0, 0)),
            ],
            out_specs=pl.BlockSpec((1, C, T), lambda b: (b, 0, 0)),
            compiler_params=pltpu.CompilerParams(
                dimension_semantics=("parallel",),
                vmem_limit_bytes=vmem_limit_bytes,
            ),
            cost_estimate=pl.CostEstimate(
                flops=2 * B * C * T + 4 * B * Bn * C,
                transcendentals=B * C,
                bytes_accessed=2 * B * C * T * itemsize + 2 * Bn * C * 4 + (Bn + C) * 4,
            ),
            input_output_aliases=({0: 0} if donate_x else {}),
        )(x, w1f, jnp.reshape(b1f, (Bn, 1)), w2f, jnp.reshape(b2f, (C, 1)))
        return out

    # ---- two-pass fallback (per-batch slab exceeds the VMEM budget) ---------
    # Tile size derived from the budget: double-buffered in + out per T column,
    # plus an f32 working column, with headroom.
    bytes_per_col = (4 * itemsize + 4) * C
    budget = int(0.85 * vmem_limit_bytes)
    tT = max(LANE, (budget // bytes_per_col // LANE) * LANE)
    if t_tile is not None:
        tT = min(tT, max(LANE, (t_tile // LANE) * LANE))
    tT = min(tT, pl.cdiv(T, LANE) * LANE)
    n_t = pl.cdiv(T, tT)

    # Pass 1: per-batch mean over T (no weights in the pipeline).
    pooled = pl.pallas_call(
        functools.partial(se_reduce_kernel, true_t=T, t_tile=tT, inv_t=1.0 / float(T)),
        out_shape=jax.ShapeDtypeStruct((B, C, 1), jnp.float32),
        grid=(B, n_t),
        in_specs=[pl.BlockSpec((1, C, tT), lambda b, t: (b, 0, t))],
        out_specs=pl.BlockSpec((1, C, 1), lambda b, t: (b, 0, 0)),
        scratch_shapes=[pltpu.VMEM((C, LANE), jnp.float32)],
        compiler_params=pltpu.CompilerParams(
            dimension_semantics=("parallel", "arbitrary"),
            vmem_limit_bytes=vmem_limit_bytes,
        ),
        cost_estimate=pl.CostEstimate(
            flops=B * C * T,
            transcendentals=0,
            bytes_accessed=B * C * T * itemsize + B * C * 4,
        ),
    )(x)

    # Tiny SE matmuls batched over all B in plain XLA (keeps the constant
    # weights out of the Pallas pipeline; MXU N=1 matvecs avoided in-kernel).
    p = pooled[:, :, 0]                                                 # (B, C) f32
    h = jnp.maximum(p @ w1f.T + b1f[None, :], 0.0)                      # (B, Bn)
    s = jax.nn.sigmoid(h @ w2f.T + b2f[None, :])[:, :, None]            # (B, C, 1) f32

    # Pass 2: out = x * s over lane-dense (1, C, tT) blocks. The ragged last
    # T tile's out-of-bounds lanes are clipped by Pallas on write-back.
    out = pl.pallas_call(
        se_scale_kernel,
        out_shape=jax.ShapeDtypeStruct((B, C, T), x.dtype),
        grid=(B, n_t),
        in_specs=[
            pl.BlockSpec((1, C, 1), lambda b, t: (b, 0, 0)),
            pl.BlockSpec((1, C, tT), lambda b, t: (b, 0, t)),
        ],
        out_specs=pl.BlockSpec((1, C, tT), lambda b, t: (b, 0, t)),
        compiler_params=pltpu.CompilerParams(
            dimension_semantics=("parallel", "parallel"),
            vmem_limit_bytes=vmem_limit_bytes,
        ),
        cost_estimate=pl.CostEstimate(
            flops=B * C * T,
            transcendentals=0,
            bytes_accessed=2 * B * C * T * itemsize + B * C * 4,
        ),
        input_output_aliases=({1: 0} if donate_x else {}),
    )(s, x)
    return out


def reference(x, w1, b1, w2, b2):
    pooled = jnp.mean(x, axis=-1)                                       # (B, C)
    h = jnp.maximum(pooled @ w1.T + b1[None, :], 0.0)                   # (B, Bn)
    s = jax.nn.sigmoid(h @ w2.T + b2[None, :])                          # (B, C)
    return x * s[:, :, None]


if __name__ == "__main__":
    key = jax.random.PRNGKey(0)
    # Small shapes; T=300 deliberately NOT a multiple of 128 to exercise the
    # no-pad full-T fused path and the iota-masked ragged tail of the fallback.
    B, C, T, BOTTLENECK = 2, 64, 300, 16

    k_x, k_w1, k_b1, k_w2, k_b2 = jax.random.split(key, 5)
    x = jax.random.normal(k_x, (B, C, T), dtype=jnp.float32)

    bound1 = 1.0 / (C ** 0.5)
    w1 = jax.random.uniform(k_w1, (BOTTLENECK, C), jnp.float32, -bound1, bound1)
    b1 = jax.random.uniform(k_b1, (BOTTLENECK,), jnp.float32, -bound1, bound1)
    bound2 = 1.0 / (BOTTLENECK ** 0.5)
    w2 = jax.random.uniform(k_w2, (C, BOTTLENECK), jnp.float32, -bound2, bound2)
    b2 = jax.random.uniform(k_b2, (C,), jnp.float32, -bound2, bound2)

    ref = reference(x, w1, b1, w2, b2)

    # 1) Default fused single-pass path.
    out_fused = se_module(x, w1, b1, w2, b2)
    jax.block_until_ready(out_fused)
    assert out_fused.shape == ref.shape, "fused path: shape mismatch"
    assert jnp.allclose(out_fused, ref, atol=1e-5, rtol=1e-5), "fused path mismatch"

    # 2) Forced two-pass fallback with 128-wide T tiles (ragged tail masked
    #    in-kernel; no jnp.pad / output slice anywhere).
    out_two = se_module(x, w1, b1, w2, b2, t_tile=128, force_two_pass=True)
    jax.block_until_ready(out_two)
    assert jnp.allclose(out_two, ref, atol=1e-5, rtol=1e-5), "two-pass path mismatch"

    # 3) bf16 input: scale computed and applied in f32, single cast at store.
    xb = x.astype(jnp.bfloat16)
    ref_b = reference(xb.astype(jnp.float32), w1, b1, w2, b2).astype(jnp.bfloat16)
    out_b = se_module(xb, w1, b1, w2, b2)
    jax.block_until_ready(out_b)
    assert jnp.allclose(out_b.astype(jnp.float32), ref_b.astype(jnp.float32),
                        atol=2e-2, rtol=2e-2), "bf16 path mismatch"

    print("KERNEL_OK")
</pallas_src>

<mosaic_0001>
module attributes {stable_mosaic.version = 11 : i64} {
  func.func @se_fused_kernel(%arg0: i32, %arg1: memref<1x64x300xf32, #tpu.memory_space<vmem>>, %arg2: memref<16x64xf32, #tpu.memory_space<vmem>>, %arg3: memref<16x1xf32, #tpu.memory_space<vmem>>, %arg4: memref<64x16xf32, #tpu.memory_space<vmem>>, %arg5: memref<64x1xf32, #tpu.memory_space<vmem>>, %arg6: memref<1x64x300xf32, #tpu.memory_space<vmem>>) attributes {dimension_semantics = [#tpu.dimension_semantics<parallel>], iteration_bounds = array<i64: 2>, scalar_prefetch = 0 : i64, scratch_operands = 0 : i64, tpu.core_type = #tpu.core_type<tc>, window_params = [{transform_indices = @transform_0, window_bounds = array<i64: 1, 64, 300>}, {pipeline_mode = #tpu.pipeline_mode<synchronous>, transform_indices = @transform_1, window_bounds = array<i64: 16, 64>}, {pipeline_mode = #tpu.pipeline_mode<synchronous>, transform_indices = @transform_2, window_bounds = array<i64: 16, 1>}, {pipeline_mode = #tpu.pipeline_mode<synchronous>, transform_indices = @transform_3, window_bounds = array<i64: 64, 16>}, {pipeline_mode = #tpu.pipeline_mode<synchronous>, transform_indices = @transform_4, window_bounds = array<i64: 64, 1>}, {transform_indices = @transform_5, window_bounds = array<i64: 1, 64, 300>}]} {
    %c0 = arith.constant 0 : index
    %c0_0 = arith.constant 0 : index
    %c0_1 = arith.constant 0 : index
    %0 = vector.load %arg1[%c0, %c0_0, %c0_1] : memref<1x64x300xf32, #tpu.memory_space<vmem>>, vector<1x64x300xf32>
    %1 = vector.shape_cast %0 : vector<1x64x300xf32> to vector<64x300xf32>
    %cst = arith.constant dense<0.000000e+00> : vector<64xf32>
    %2 = vector.multi_reduction <add>, %1, %cst [1] : vector<64x300xf32> to vector<64xf32>
    %3 = vector.shape_cast %2 : vector<64xf32> to vector<64x1xf32>
    %cst_2 = arith.constant 0.00333333341 : f32
    %4 = vector.broadcast %cst_2 : f32 to vector<64x1xf32>
    %5 = arith.mulf %3, %4 : vector<64x1xf32>
    %c0_3 = arith.constant 0 : index
    %c0_4 = arith.constant 0 : index
    %6 = vector.load %arg2[%c0_3, %c0_4] : memref<16x64xf32, #tpu.memory_space<vmem>>, vector<16x64xf32>
    %cst_5 = arith.constant dense<0.000000e+00> : vector<16x1xf32>
    %7 = tpu.matmul %6, %5, %cst_5 {dimension_numbers = #tpu.dot_dimension_numbers<[1], [0], [0], [1], [0, 0, 1, 1], [], []>} : vector<16x64xf32>, vector<64x1xf32>, vector<16x1xf32> -> vector<16x1xf32>
    %c0_6 = arith.constant 0 : index
    %c0_7 = arith.constant 0 : index
    %8 = vector.load %arg3[%c0_6, %c0_7] : memref<16x1xf32, #tpu.memory_space<vmem>>, vector<16x1xf32>
    %9 = arith.addf %7, %8 : vector<16x1xf32>
    %cst_8 = arith.constant 0.000000e+00 : f32
    %10 = vector.broadcast %cst_8 : f32 to vector<16x1xf32>
    %11 = arith.maximumf %9, %10 : vector<16x1xf32>
    %c0_9 = arith.constant 0 : index
    %c0_10 = arith.constant 0 : index
    %12 = vector.load %arg4[%c0_9, %c0_10] : memref<64x16xf32, #tpu.memory_space<vmem>>, vector<64x16xf32>
    %cst_11 = arith.constant dense<0.000000e+00> : vector<64x1xf32>
    %13 = tpu.matmul %12, %11, %cst_11 {dimension_numbers = #tpu.dot_dimension_numbers<[1], [0], [0], [1], [0, 0, 1, 1], [], []>} : vector<64x16xf32>, vector<16x1xf32>, vector<64x1xf32> -> vector<64x1xf32>
    %c0_12 = arith.constant 0 : index
    %c0_13 = arith.constant 0 : index
    %14 = vector.load %arg5[%c0_12, %c0_13] : memref<64x1xf32, #tpu.memory_space<vmem>>, vector<64x1xf32>
    %15 = arith.addf %13, %14 : vector<64x1xf32>
    %16 = arith.negf %15 : vector<64x1xf32>
    %17 = math.exp %16 : vector<64x1xf32>
    %cst_14 = arith.constant 1.000000e+00 : f32
    %18 = vector.broadcast %cst_14 : f32 to vector<64x1xf32>
    %19 = arith.addf %18, %17 : vector<64x1xf32>
    %20 = arith.divf %18, %19 : vector<64x1xf32>
    %21 = vector.broadcast %20 : vector<64x1xf32> to vector<64x300xf32>
    %22 = arith.mulf %1, %21 : vector<64x300xf32>
    %c0_15 = arith.constant 0 : index
    %c0_16 = arith.constant 0 : index
    %c0_17 = arith.constant 0 : index
    %23 = vector.load %arg6[%c0_15, %c0_16, %c0_17] : memref<1x64x300xf32, #tpu.memory_space<vmem>>, vector<1x64x300xf32>
    %24 = vector.shape_cast %23 : vector<1x64x300xf32> to vector<64x300xf32>
    %25 = vector.shape_cast %22 : vector<64x300xf32> to vector<1x64x300xf32>
    tpu.vector_store %arg6[%c0_15, %c0_16, %c0_17], %25 {strides = array<i32>} : memref<1x64x300xf32, #tpu.memory_space<vmem>>, vector<1x64x300xf32>,
    return
  }
  func.func @transform_0(%arg0: i32) -> (i32, i32, i32) {
    %c0_i32 = arith.constant 0 : i32
    %c0_i32_0 = arith.constant 0 : i32
    %c0_i32_1 = arith.constant 0 : i32
    return %arg0, %c0_i32, %c0_i32_0 : i32, i32, i32
  }
  func.func @transform_1(%arg0: i32) -> (i32, i32) {
    %c0_i32 = arith.constant 0 : i32
    %c0_i32_0 = arith.constant 0 : i32
    %c0_i32_1 = arith.constant 0 : i32
    return %c0_i32, %c0_i32_0 : i32, i32
  }
  func.func @transform_2(%arg0: i32) -> (i32, i32) {
    %c0_i32 = arith.constant 0 : i32
    %c0_i32_0 = arith.constant 0 : i32
    %c0_i32_1 = arith.constant 0 : i32
    return %c0_i32, %c0_i32_0 : i32, i32
  }
  func.func @transform_3(%arg0: i32) -> (i32, i32) {
    %c0_i32 = arith.constant 0 : i32
    %c0_i32_0 = arith.constant 0 : i32
    %c0_i32_1 = arith.constant 0 : i32
    return %c0_i32, %c0_i32_0 : i32, i32
  }
  func.func @transform_4(%arg0: i32) -> (i32, i32) {
    %c0_i32 = arith.constant 0 : i32
    %c0_i32_0 = arith.constant 0 : i32
    %c0_i32_1 = arith.constant 0 : i32
    return %c0_i32, %c0_i32_0 : i32, i32
  }
  func.func @transform_5(%arg0: i32) -> (i32, i32, i32) {
    %c0_i32 = arith.constant 0 : i32
    %c0_i32_0 = arith.constant 0 : i32
    %c0_i32_1 = arith.constant 0 : i32
    return %arg0, %c0_i32, %c0_i32_0 : i32, i32, i32
  }
}

</mosaic_0001>

<llo_original>
// kernel: tpu_custom_call.1
$region0: #{tpu_custom_call.1}
  #allocation0 [shape = 'u32[]', space=smem, size = 0x4, offset = 0x4, fixed_abs, tag = 'smem constant byte address 0x4 - core index']
  #allocation1 [shape = 'u32[72,128]{1,0:T(1,128)}', space=vmem, size = 0x9000, scoped, tag = 'internal scratch']
  %s0 = inlined_call_operand.hbm [shape: f32[2,64,300], index: 0, kind: input, shape index: {}]
  %s1 = inlined_call_operand.vmem [shape: f32[16,64], index: 1, kind: input, shape index: {}]
  %s2 = inlined_call_operand.vmem [shape: f32[16,1], index: 2, kind: input, shape index: {}]
  %s3 = inlined_call_operand.vmem [shape: f32[64,16], index: 3, kind: input, shape index: {}]
  %s4 = inlined_call_operand.vmem [shape: f32[64,1], index: 4, kind: input, shape index: {}]
  %s5 = inlined_call_operand.hbm [shape: f32[2,64,300], index: 5, kind: output, shape index: {}]
  %s6 = sld [smem:[#allocation0]]
  $region57: #{tpu_custom_call.1} parent=0
    _
  %s8 = ssub.s32 1, %s6
  %s9 = scalar_select 0, %s8, %s6
  $region1: #{tpu_custom_call.1} parent=0
    #allocation2 [shape = 'u8[196608]{0}', space=vmem, size = 0x30000, scoped, tag = 'input window, operand 0']
    #allocation3 [shape = 's32[2]{0}', space=sflag, size = 0x8, scoped, tag = 'scoped memory for tpu_custom_call.1']
    #allocation4 [shape = 's32[2]{0}', space=sflag, size = 0x8, scoped, tag = 'scoped memory for tpu_custom_call.1']
    #allocation5 [shape = 'u8[196608]{0}', space=vmem, size = 0x30000, scoped, tag = 'output window, operand 0']
    %10 = vsyncpa [#allocation3], 0
    %s11 = scalar_lea.sflag [#allocation3], 1
    %12 = vsyncpa %s11, 0
    %13 = vsyncpa [#allocation4], 0
    %s14 = scalar_lea.sflag [#allocation4], 1
    %15 = vsyncpa %s14, 0
    loop: start=0, step=1, limit=4
    $region2: #{tpu_custom_call.1} parent=1 // loop_pre_header
      _
    $region3: #{tpu_custom_call.1} parent=1 // loop_header
      %s17 = sphi 0, %s21
      %p18 = scmp.ge.s32.totalorder %s17, 4
      %s27 = sphi 0, %s29
      %s30 = sphi 0, %s27
      %s31 = sphi 0, %s30
      %s47 = sphi 0, %s31
      %s51 = sphi 0, %s51
      %s53 = sphi 0, %s51
      %s54 = sphi 0, %s53
      %s68 = sphi 0, %s54
      %s72 = sphi 0, %s72
      %s74 = sphi 0, %s72
      %s75 = sphi 0, %s74
      %s89 = sphi 0, %s75
      %s93 = sphi 0, %s93
      %s95 = sphi 0, %s93
      %s96 = sphi 0, %s95
      %s110 = sphi 0, %s96
      %s114 = sphi 0, %s114
      %s116 = sphi 0, %s114
      %s117 = sphi 0, %s116
      %s131 = sphi 0, %s117
      %s137 = sphi 0, %s139
      %s140 = sphi 0, %s137
      %s141 = sphi 0, %s140
      %s157 = sphi 0, %s141
    $region4: #{tpu_custom_call.1} parent=1 // loop_header_branch
      %20 = sbr.rel (%p18) target = $region8
    $region5: #{tpu_custom_call.1} parent=1 // loop_body
      %s22 = ssub.s32 %s17, 1
      %s23 = ssub.s32 %s17, 2
      %s24 = sadd.s32 %s17, 1
      %s25 = ssub.s32 %s17, %s24
      %p26 = scmp.eq.s32.totalorder %s25, 0
      %s28 = sadd.s32 %s27, 1
      %s29 = scalar_select %p26, %s27, %s28
      %p32 = pneg %p26
      %p33 = scmp.eq.s32.totalorder %s17, 1
      %p34 = por %p32, %p33
      %p35 = scmp.ne.s32.totalorder %s27, %s30
      %p36 = scmp.eq.s32.totalorder %s17, 0
      %p37 = por %p35, %p36
      %p38 = scmp.ne.s32.totalorder %s27, %s30
      %p39 = scmp.eq.s32.totalorder %s22, 1
      %p40 = por %p38, %p39
      %p41 = scmp.ne.s32.totalorder %s30, %s31
      %p42 = scmp.eq.s32.totalorder %s22, 0
      %p43 = por %p41, %p42
      %p44 = scmp.ne.s32.totalorder %s30, %s31
      %p45 = scmp.eq.s32.totalorder %s23, 1
      %p46 = por %p44, %p45
      %p48 = scmp.ne.s32.totalorder %s31, %s47
      %p49 = scmp.eq.s32.totalorder %s23, 0
      %p50 = por %p48, %p49
      %s52 = sadd.s32 %s51, 1
      %p55 = scmp.eq.s32.totalorder %s17, 1
      %p56 = scmp.ne.s32.totalorder %s51, %s53
      %p57 = scmp.eq.s32.totalorder %s17, 0
      %p58 = por %p56, %p57
      %p59 = scmp.ne.s32.totalorder %s51, %s53
      %p60 = scmp.eq.s32.totalorder %s22, 1
      %p61 = por %p59, %p60
      %p62 = scmp.ne.s32.totalorder %s53, %s54
      %p63 = scmp.eq.s32.totalorder %s22, 0
      %p64 = por %p62, %p63
      %p65 = scmp.ne.s32.totalorder %s53, %s54
      %p66 = scmp.eq.s32.totalorder %s23, 1
      %p67 = por %p65, %p66
      %p69 = scmp.ne.s32.totalorder %s54, %s68
      %p70 = scmp.eq.s32.totalorder %s23, 0
      %p71 = por %p69, %p70
      %s73 = sadd.s32 %s72, 1
      %p76 = scmp.eq.s32.totalorder %s17, 1
      %p77 = scmp.ne.s32.totalorder %s72, %s74
      %p78 = scmp.eq.s32.totalorder %s17, 0
      %p79 = por %p77, %p78
      %p80 = scmp.ne.s32.totalorder %s72, %s74
      %p81 = scmp.eq.s32.totalorder %s22, 1
      %p82 = por %p80, %p81
      %p83 = scmp.ne.s32.totalorder %s74, %s75
      %p84 = scmp.eq.s32.totalorder %s22, 0
      %p85 = por %p83, %p84
      %p86 = scmp.ne.s32.totalorder %s74, %s75
      %p87 = scmp.eq.s32.totalorder %s23, 1
      %p88 = por %p86, %p87
      %p90 = scmp.ne.s32.totalorder %s75, %s89
      %p91 = scmp.eq.s32.totalorder %s23, 0
      %p92 = por %p90, %p91
      %s94 = sadd.s32 %s93, 1
      %p97 = scmp.eq.s32.totalorder %s17, 1
      %p98 = scmp.ne.s32.totalorder %s93, %s95
      %p99 = scmp.eq.s32.totalorder %s17, 0
      %p100 = por %p98, %p99
      %p101 = scmp.ne.s32.totalorder %s93, %s95
      %p102 = scmp.eq.s32.totalorder %s22, 1
      %p103 = por %p101, %p102
      %p104 = scmp.ne.s32.totalorder %s95, %s96
      %p105 = scmp.eq.s32.totalorder %s22, 0
      %p106 = por %p104, %p105
      %p107 = scmp.ne.s32.totalorder %s95, %s96
      %p108 = scmp.eq.s32.totalorder %s23, 1
      %p109 = por %p107, %p108
      %p111 = scmp.ne.s32.totalorder %s96, %s110
      %p112 = scmp.eq.s32.totalorder %s23, 0
      %p113 = por %p111, %p112
      %s115 = sadd.s32 %s114, 1
      %p118 = scmp.eq.s32.totalorder %s17, 1
      %p119 = scmp.ne.s32.totalorder %s114, %s116
      %p120 = scmp.eq.s32.totalorder %s17, 0
      %p121 = por %p119, %p120
      %p122 = scmp.ne.s32.totalorder %s114, %s116
      %p123 = scmp.eq.s32.totalorder %s22, 1
      %p124 = por %p122, %p123
      %p125 = scmp.ne.s32.totalorder %s116, %s117
      %p126 = scmp.eq.s32.totalorder %s22, 0
      %p127 = por %p125, %p126
      %p128 = scmp.ne.s32.totalorder %s116, %s117
      %p129 = scmp.eq.s32.totalorder %s23, 1
      %p130 = por %p128, %p129
      %p132 = scmp.ne.s32.totalorder %s117, %s131
      %p133 = scmp.eq.s32.totalorder %s23, 0
      %p134 = por %p132, %p133
      %s135 = ssub.s32 %s17, %s24
      %p136 = scmp.eq.s32.totalorder %s135, 0
      %s138 = sadd.s32 %s137, 1
      %s139 = scalar_select %p136, %s137, %s138
      %p142 = pneg %p136
      %p143 = scmp.eq.s32.totalorder %s17, 1
      %p144 = por %p142, %p143
      %p145 = scmp.ne.s32.totalorder %s137, %s140
      %p146 = scmp.eq.s32.totalorder %s17, 0
      %p147 = por %p145, %p146
      %p148 = scmp.ne.s32.totalorder %s137, %s140
      %p149 = scmp.eq.s32.totalorder %s22, 1
      %p150 = por %p148, %p149
      %p151 = scmp.ne.s32.totalorder %s140, %s141
      %p152 = scmp.eq.s32.totalorder %s22, 0
      %p153 = por %p151, %p152
      %p154 = scmp.ne.s32.totalorder %s140, %s141
      %p155 = scmp.eq.s32.totalorder %s23, 1
      %p156 = por %p154, %p155
      %p158 = scmp.ne.s32.totalorder %s141, %s157
      %p159 = scmp.eq.s32.totalorder %s23, 0
      %p160 = por %p158, %p159
      %p161 = scmp.le.s32.totalorder 1, %s17
      %p162 = scmp.lt.s32.totalorder %s17, 3
      %p163 = pnand %p161, %p162
      %p164 = pneg %p163
      // Predicated region
      $region9: #{tpu_custom_call.1} parent=5 // pred_check
        _
      $region10: #{tpu_custom_call.1} parent=5 // pred_check_branch
        %166 = sbr.rel (%p163) target = $region12
      $region11: #{tpu_custom_call.1} parent=5 // pred_region
        %s167 = ssub.s32 %s17, 1
        // Predicated region
        $region13: #{tpu_custom_call.1} parent=11 // pred_check
          %p168 = pneg %p64
        $region14: #{tpu_custom_call.1} parent=11 // pred_check_branch
          %170 = sbr.rel (%p168) target = $region16
        $region15: #{tpu_custom_call.1} parent=11 // pred_region
          _
        $region16: #{tpu_custom_call.1} parent=11 // pred_fallthru
          _
        // Predicated region
        $region17: #{tpu_custom_call.1} parent=11 // pred_check
          %p171 = pneg %p85
        $region18: #{tpu_custom_call.1} parent=11 // pred_check_branch
          %173 = sbr.rel (%p171) target = $region20
        $region19: #{tpu_custom_call.1} parent=11 // pred_region
          _
        $region20: #{tpu_custom_call.1} parent=11 // pred_fallthru
          _
        // Predicated region
        $region21: #{tpu_custom_call.1} parent=11 // pred_check
          %p174 = pneg %p106
        $region22: #{tpu_custom_call.1} parent=11 // pred_check_branch
          %176 = sbr.rel (%p174) target = $region24
        $region23: #{tpu_custom_call.1} parent=11 // pred_region
          _
        $region24: #{tpu_custom_call.1} parent=11 // pred_fallthru
          _
        // Predicated region
        $region25: #{tpu_custom_call.1} parent=11 // pred_check
          %p177 = pneg %p127
        $region26: #{tpu_custom_call.1} parent=11 // pred_check_branch
          %179 = sbr.rel (%p177) target = $region28
        $region27: #{tpu_custom_call.1} parent=11 // pred_region
          _
        $region28: #{tpu_custom_call.1} parent=11 // pred_fallthru
          _
      $region12: #{tpu_custom_call.1} parent=5 // pred_fallthru
        _
      %p180 = scmp.lt.s32.totalorder %s17, 2
      // Predicated region
      $region29: #{tpu_custom_call.1} parent=5 // pred_check
        %p181 = pneg %p180
      $region30: #{tpu_custom_call.1} parent=5 // pred_check_branch
        %183 = sbr.rel (%p181) target = $region32
      $region31: #{tpu_custom_call.1} parent=5 // pred_region
        // Predicated region
        $region33: #{tpu_custom_call.1} parent=31 // pred_check
          %p184 = pneg %p37
        $region34: #{tpu_custom_call.1} parent=31 // pred_check_branch
          %186 = sbr.rel (%p184) target = $region36
        $region35: #{tpu_custom_call.1} parent=31 // pred_region
          %s187 = sand.u32 %s27, 1
          %s188 = scalar_lea.sflag [#allocation3], %s187
          %s189 = sand.u32 %s27, 1
          %s190 = smul.addr %s189, 192
          %s191 = scalar_lea.vmem [#allocation2], %s190
          %193 = vsyncadd %s188, 0
          %s194 = smul.addr %s17, 24
          %s195 = smul.addr %s194, 8
          %s196 = scalar_lea.hbm %s0, %s195
          %s197 = sshll.u32 %s196, 4
          %s198 = int_to_ptr.hbm [resolvable:$true] %s197
          %s199 = sshll.u32 %s191, 4
          %s200 = int_to_ptr.vmem [resolvable:$true] %s199
          %205 = dma.hbm_to_vmem [thread:$0]  %s198, 3072, %s200, %s188, 384, 384, 24
        $region36: #{tpu_custom_call.1} parent=31 // pred_fallthru
          _
      $region32: #{tpu_custom_call.1} parent=5 // pred_fallthru
        _
      %p206 = scmp.le.s32.totalorder 1, %s17
      %p207 = scmp.lt.s32.totalorder %s17, 3
      %p208 = pnand %p206, %p207
      %p209 = pneg %p208
      // Predicated region
      $region37: #{tpu_custom_call.1} parent=5 // pred_check
        _
      $region38: #{tpu_custom_call.1} parent=5 // pred_check_branch
        %211 = sbr.rel (%p208) target = $region40
      $region39: #{tpu_custom_call.1} parent=5 // pred_region
        %s212 = ssub.s32 %s17, 1
        %s213 = sand.u32 %s30, 1
        %s214 = scalar_lea.sflag [#allocation3], %s213
        %s215 = sand.u32 %s30, 1
        %s216 = smul.addr %s215, 192
        %s217 = scalar_lea.vmem [#allocation2], %s216
        // Predicated region
        $region41: #{tpu_custom_call.1} parent=39 // pred_check
          %p218 = pneg %p43
        $region42: #{tpu_custom_call.1} parent=39 // pred_check_branch
          %220 = sbr.rel (%p218) target = $region44
        $region43: #{tpu_custom_call.1} parent=39 // pred_region
          %222 = dma.done %s214, 3072
        $region44: #{tpu_custom_call.1} parent=39 // pred_fallthru
          _
        %s223 = sand.u32 %s30, 1
        %s224 = scalar_lea.sflag [#allocation3], %s223
        %s225 = sand.u32 %s30, 1
        %s226 = smul.addr %s225, 192
        %s227 = scalar_lea.vmem [#allocation2], %s226
        %p228 = pneg %p43
        %p229 = pneg %p40
        %p230 = pneg %p64
        %p231 = pneg %p61
        %p232 = pneg %p85
        %p233 = pneg %p82
        %p234 = pneg %p106
        %p235 = pneg %p103
        %p236 = pneg %p127
        %p237 = pneg %p124
        %p238 = pneg %p153
        %p239 = pneg %p150
        %s240 = sand.u32 %s140, 1
        %s241 = scalar_lea.sflag [#allocation4], %s240
        %s242 = sand.u32 %s140, 1
        %s243 = smul.addr %s242, 192
        %s244 = scalar_lea.vmem [#allocation5], %s243
        %v245 = vld [vmem:[%s217] sm:$0xff]
        %v246 = vld [vmem:[%s217 + $0x8] sm:$0xff]
        %v247 = vld [vmem:[%s217 + $0x10] sm:$0xff]
        %v248 = vld [vmem:[%s217 + $0x18] sm:$0xff]
        %v249 = vld [vmem:[%s217 + $0x20] sm:$0xff]
        %v250 = vld [vmem:[%s217 + $0x28] sm:$0xff]
        %v251 = vld [vmem:[%s217 + $0x30] sm:$0xff]
        %v252 = vld [vmem:[%s217 + $0x38] sm:$0xff]
        %v253 = vld [vmem:[%s217 + $0x40] sm:$0xff]
        %v254 = vld [vmem:[%s217 + $0x48] sm:$0xff]
        %v255 = vld [vmem:[%s217 + $0x50] sm:$0xff]
        %v256 = vld [vmem:[%s217 + $0x58] sm:$0xff]
        %v257 = vld [vmem:[%s217 + $0x60] sm:$0xff]
        %v258 = vld [vmem:[%s217 + $0x68] sm:$0xff]
        %v259 = vld [vmem:[%s217 + $0x70] sm:$0xff]
        %v260 = vld [vmem:[%s217 + $0x78] sm:$0xff]
        %v261 = vld [vmem:[%s217 + $0x80] sm:$0xff]
        %v262 = vld [vmem:[%s217 + $0x88] sm:$0xff]
        %v263 = vld [vmem:[%s217 + $0x90] sm:$0xff]
        %v264 = vld [vmem:[%s217 + $0x98] sm:$0xff]
        %v265 = vld [vmem:[%s217 + $0xa0] sm:$0xff]
        %v266 = vld [vmem:[%s217 + $0xa8] sm:$0xff]
        %v267 = vld [vmem:[%s217 + $0xb0] sm:$0xff]
        %v268 = vld [vmem:[%s217 + $0xb8] sm:$0xff]
        %v269 = vadd.f32 %v245, %v246
        %vm270 = vcmask 359424
        %v271 = vsel %vm270, %v247, 0.0
        %v272 = vadd.f32 %v269, %v271
        %273 = vadd.xlane.f32.xlu0 %v272
        %v274 = vpop.xlane.xlu0 %273
        %v275 = vadd.f32 %v248, %v249
        %v276 = vsel %vm270, %v250, 0.0
        %v277 = vadd.f32 %v275, %v276
        %278 = vadd.xlane.f32.xlu0 %v277
        %v279 = vpop.xlane.xlu0 %278
        %v280 = vadd.f32 %v251, %v252
        %v281 = vsel %vm270, %v253, 0.0
        %v282 = vadd.f32 %v280, %v281
        %283 = vadd.xlane.f32.xlu0 %v282
        %v284 = vpop.xlane.xlu0 %283
        %v285 = vadd.f32 %v254, %v255
        %v286 = vsel %vm270, %v256, 0.0
        %v287 = vadd.f32 %v285, %v286
        %288 = vadd.xlane.f32.xlu0 %v287
        %v289 = vpop.xlane.xlu0 %288
        %v290 = vadd.f32 %v257, %v258
        %v291 = vsel %vm270, %v259, 0.0
        %v292 = vadd.f32 %v290, %v291
        %293 = vadd.xlane.f32.xlu0 %v292
        %v294 = vpop.xlane.xlu0 %293
        %v295 = vadd.f32 %v260, %v261
        %v296 = vsel %vm270, %v262, 0.0
        %v297 = vadd.f32 %v295, %v296
        %298 = vadd.xlane.f32.xlu0 %v297
        %v299 = vpop.xlane.xlu0 %298
        %v300 = vadd.f32 %v263, %v264
        %v301 = vsel %vm270, %v265, 0.0
        %v302 = vadd.f32 %v300, %v301
        %303 = vadd.xlane.f32.xlu0 %v302
        %v304 = vpop.xlane.xlu0 %303
        %v305 = vadd.f32 %v266, %v267
        %v306 = vsel %vm270, %v268, 0.0
        %v307 = vadd.f32 %v305, %v306
        %308 = vadd.xlane.f32.xlu0 %v307
        %v309 = vpop.xlane.xlu0 %308
        %v310 = vmul.f32 %v274, 0.0033333334
        %v311 = vmul.f32 %v279, 0.0033333334
        %v312 = vmul.f32 %v284, 0.0033333334
        %v313 = vmul.f32 %v289, 0.0033333334
        %v314 = vmul.f32 %v294, 0.0033333334
        %v315 = vmul.f32 %v299, 0.0033333334
        %v316 = vmul.f32 %v304, 0.0033333334
        %v317 = vmul.f32 %v309, 0.0033333334
        %v318 = vld [vmem:[%s1] sm:$0xff]
        %v319 = vld [vmem:[%s1 + $0x8] sm:$0xff]
        %v320 = vld [vmem:[%s2] sm:$0xff]
        %v321 = vld [vmem:[%s2 + $0x8] sm:$0xff]
        %vm322 = vcmask 523264
        %v324 = vsel %vm322, %v318, 0
        %v327 = vsel %vm322, %v319, 0
        %329 = vmatpush.msra.mxu0 0.0
        %330 = vmatpush.msra.mxu0 0.0
        %331 = vmatpush.msra.mxu0 0.0
        %332 = vmatpush.msra.mxu0 0.0
        %333 = vmatpush.msra.mxu0 0.0
        %334 = vmatpush.msra.mxu0 0.0
        %335 = vmatpush.msra.mxu0 0.0
        %336 = vmatpush.msra.mxu0 0.0
        %337 = vmatpush.msra.mxu0 %v317
        %338 = vmatpush.msra.mxu0 %v316
        %339 = vmatpush.msra.mxu0 %v315
        %340 = vmatpush.msra.mxu0 %v314
        %341 = vmatpush.msra.mxu0 %v313
        %342 = vmatpush.msra.mxu0 %v312
        %343 = vmatpush.msra.mxu0 %v311
        %344 = vmatpush.msra.mxu0 %v310
        %345 = vmatmul.f32.gmra.mxu0 %v324
        %v346 = vpop.f32.mrf.mxu0
        %v347 = vadd.f32 %v320, %v346
        %348 = vmatmul.f32.gmra.mxu0 %v327
        %v349 = vpop.f32.mrf.mxu0
        %v350 = vadd.f32 %v321, %v349
        %351 = vdwg.mxu0
        %v352 = vmax.f32 %v347, 0.0
        %v353 = vmax.f32 %v350, 0.0
        %v354 = vld [vmem:[%s3] sm:$0xff]
        %v355 = vld [vmem:[%s3 + $0x8] sm:$0xff]
        %v356 = vld [vmem:[%s3 + $0x10] sm:$0xff]
        %v357 = vld [vmem:[%s3 + $0x18] sm:$0xff]
        %v358 = vld [vmem:[%s3 + $0x20] sm:$0xff]
        %v359 = vld [vmem:[%s3 + $0x28] sm:$0xff]
        %v360 = vld [vmem:[%s3 + $0x30] sm:$0xff]
        %v361 = vld [vmem:[%s3 + $0x38] sm:$0xff]
        %v362 = vld [vmem:[%s4] sm:$0xff]
        %v363 = vld [vmem:[%s4 + $0x8] sm:$0xff]
        %v364 = vld [vmem:[%s4 + $0x10] sm:$0xff]
        %v365 = vld [vmem:[%s4 + $0x18] sm:$0xff]
        %v366 = vld [vmem:[%s4 + $0x20] sm:$0xff]
        %v367 = vld [vmem:[%s4 + $0x28] sm:$0xff]
        %v368 = vld [vmem:[%s4 + $0x30] sm:$0xff]
        %v369 = vld [vmem:[%s4 + $0x38] sm:$0xff]
        %vm370 = vcmask 130048
        %v372 = vsel %vm370, %v354, 0
        %v375 = vsel %vm370, %v355, 0
        %v378 = vsel %vm370, %v356, 0
        %v381 = vsel %vm370, %v357, 0
        %v384 = vsel %vm370, %v358, 0
        %v387 = vsel %vm370, %v359, 0
        %v390 = vsel %vm370, %v360, 0
        %v393 = vsel %vm370, %v361, 0
        %395 = vmatpush.msra.mxu0 0.0
        %396 = vmatpush.msra.mxu0 0.0
        %397 = vmatpush.msra.mxu0 0.0
        %398 = vmatpush.msra.mxu0 0.0
        %399 = vmatpush.msra.mxu0 0.0
        %400 = vmatpush.msra.mxu0 0.0
        %401 = vmatpush.msra.mxu0 0.0
        %402 = vmatpush.msra.mxu0 0.0
        %403 = vmatpush.msra.mxu0 0.0
        %404 = vmatpush.msra.mxu0 0.0
        %405 = vmatpush.msra.mxu0 0.0
        %406 = vmatpush.msra.mxu0 0.0
        %407 = vmatpush.msra.mxu0 0.0
        %408 = vmatpush.msra.mxu0 0.0
        %409 = vmatpush.msra.mxu0 %v353
        %410 = vmatpush.msra.mxu0 %v352
        %411 = vmatmul.f32.gmra.mxu0 %v372
        %v412 = vpop.f32.mrf.mxu0
        %v413 = vadd.f32 %v362, %v412
        %414 = vmatmul.f32.gmra.mxu0 %v375
        %v415 = vpop.f32.mrf.mxu0
        %v416 = vadd.f32 %v363, %v415
        %417 = vmatmul.f32.gmra.mxu0 %v378
        %v418 = vpop.f32.mrf.mxu0
        %v419 = vadd.f32 %v364, %v418
        %420 = vmatmul.f32.gmra.mxu0 %v381
        %v421 = vpop.f32.mrf.mxu0
        %v422 = vadd.f32 %v365, %v421
        %423 = vmatmul.f32.gmra.mxu0 %v384
        %v424 = vpop.f32.mrf.mxu0
        %v425 = vadd.f32 %v366, %v424
        %426 = vmatmul.f32.gmra.mxu0 %v387
        %v427 = vpop.f32.mrf.mxu0
        %v428 = vadd.f32 %v367, %v427
        %429 = vmatmul.f32.gmra.mxu0 %v390
        %v430 = vpop.f32.mrf.mxu0
        %v431 = vadd.f32 %v368, %v430
        %432 = vmatmul.f32.gmra.mxu0 %v393
        %v433 = vpop.f32.mrf.mxu0
        %v434 = vadd.f32 %v369, %v433
        %435 = vdwg.mxu0
        %v436 = vxor.u32 %v413, 2147483648
        %v437 = vxor.u32 %v416, 2147483648
        %v438 = vxor.u32 %v419, 2147483648
        %v439 = vxor.u32 %v422, 2147483648
        %v440 = vxor.u32 %v425, 2147483648
        %v441 = vxor.u32 %v428, 2147483648
        %v442 = vxor.u32 %v431, 2147483648
        %v443 = vxor.u32 %v434, 2147483648
        %v444 = vmul.f32 %v436, 1.442695
        %v445 = vpow.pop %v444
        %v446 = vmul.f32 %v437, 1.442695
        %v447 = vpow.pop %v446
        %v448 = vmul.f32 %v438, 1.442695
        %v449 = vpow.pop %v448
        %v450 = vmul.f32 %v439, 1.442695
        %v451 = vpow.pop %v450
        %v452 = vmul.f32 %v440, 1.442695
        %v453 = vpow.pop %v452
        %v454 = vmul.f32 %v441, 1.442695
        %v455 = vpow.pop %v454
        %v456 = vmul.f32 %v442, 1.442695
        %v457 = vpow.pop %v456
        %v458 = vmul.f32 %v443, 1.442695
        %v459 = vpow.pop %v458
        %v460 = vadd.f32 %v445, 1.0
        %v461 = vadd.f32 %v447, 1.0
        %v462 = vadd.f32 %v449, 1.0
        %v463 = vadd.f32 %v451, 1.0
        %v464 = vadd.f32 %v453, 1.0
        %v465 = vadd.f32 %v455, 1.0
        %v466 = vadd.f32 %v457, 1.0
        %v467 = vadd.f32 %v459, 1.0
        %v468 = vrcp.pop %v460
        %v469 = vmul.f32 %v460, %v468
        %v470 = vsub.f32 1.0, %v469
        %v471 = vmul.f32 %v468, %v470
        %v472 = vadd.f32 %v468, %v471
        %vm473 = vweird.f32 %v460
        %vm474 = vweird.f32 %v468
        %vm475 = vmor %vm473, %vm474
        %v476 = vsel %vm475, %v468, %v472
        %v477 = vand.u32 2147483647, %v460
        %vm478 = vcmp.eq.f32.partialorder %v477, 8.507059e+37
        %v479 = vand.u32 %v460, 2147483648
        %v480 = vor.u32 1.1754944e-38, %v479
        %v481 = vsel %vm478, %v480, %v476
        %v482 = vmul.f32 1.0, %v481
        %v483 = vrcp.pop %v461
        %v484 = vmul.f32 %v461, %v483
        %v485 = vsub.f32 1.0, %v484
        %v486 = vmul.f32 %v483, %v485
        %v487 = vadd.f32 %v483, %v486
        %vm488 = vweird.f32 %v461
        %vm489 = vweird.f32 %v483
        %vm490 = vmor %vm488, %vm489
        %v491 = vsel %vm490, %v483, %v487
        %v492 = vand.u32 2147483647, %v461
        %vm493 = vcmp.eq.f32.partialorder %v492, 8.507059e+37
        %v494 = vand.u32 %v461, 2147483648
        %v495 = vor.u32 1.1754944e-38, %v494
        %v496 = vsel %vm493, %v495, %v491
        %v497 = vmul.f32 1.0, %v496
        %v498 = vrcp.pop %v462
        %v499 = vmul.f32 %v462, %v498
        %v500 = vsub.f32 1.0, %v499
        %v501 = vmul.f32 %v498, %v500
        %v502 = vadd.f32 %v498, %v501
        %vm503 = vweird.f32 %v462
        %vm504 = vweird.f32 %v498
        %vm505 = vmor %vm503, %vm504
        %v506 = vsel %vm505, %v498, %v502
        %v507 = vand.u32 2147483647, %v462
        %vm508 = vcmp.eq.f32.partialorder %v507, 8.507059e+37
        %v509 = vand.u32 %v462, 2147483648
        %v510 = vor.u32 1.1754944e-38, %v509
        %v511 = vsel %vm508, %v510, %v506
        %v512 = vmul.f32 1.0, %v511
        %v513 = vrcp.pop %v463
        %v514 = vmul.f32 %v463, %v513
        %v515 = vsub.f32 1.0, %v514
        %v516 = vmul.f32 %v513, %v515
        %v517 = vadd.f32 %v513, %v516
        %vm518 = vweird.f32 %v463
        %vm519 = vweird.f32 %v513
        %vm520 = vmor %vm518, %vm519
        %v521 = vsel %vm520, %v513, %v517
        %v522 = vand.u32 2147483647, %v463
        %vm523 = vcmp.eq.f32.partialorder %v522, 8.507059e+37
        %v524 = vand.u32 %v463, 2147483648
        %v525 = vor.u32 1.1754944e-38, %v524
        %v526 = vsel %vm523, %v525, %v521
        %v527 = vmul.f32 1.0, %v526
        %v528 = vrcp.pop %v464
        %v529 = vmul.f32 %v464, %v528
        %v530 = vsub.f32 1.0, %v529
        %v531 = vmul.f32 %v528, %v530
        %v532 = vadd.f32 %v528, %v531
        %vm533 = vweird.f32 %v464
        %vm534 = vweird.f32 %v528
        %vm535 = vmor %vm533, %vm534
        %v536 = vsel %vm535, %v528, %v532
        %v537 = vand.u32 2147483647, %v464
        %vm538 = vcmp.eq.f32.partialorder %v537, 8.507059e+37
        %v539 = vand.u32 %v464, 2147483648
        %v540 = vor.u32 1.1754944e-38, %v539
        %v541 = vsel %vm538, %v540, %v536
        %v542 = vmul.f32 1.0, %v541
        %v543 = vrcp.pop %v465
        %v544 = vmul.f32 %v465, %v543
        %v545 = vsub.f32 1.0, %v544
        %v546 = vmul.f32 %v543, %v545
        %v547 = vadd.f32 %v543, %v546
        %vm548 = vweird.f32 %v465
        %vm549 = vweird.f32 %v543
        %vm550 = vmor %vm548, %vm549
        %v551 = vsel %vm550, %v543, %v547
        %v552 = vand.u32 2147483647, %v465
        %vm553 = vcmp.eq.f32.partialorder %v552, 8.507059e+37
        %v554 = vand.u32 %v465, 2147483648
        %v555 = vor.u32 1.1754944e-38, %v554
        %v556 = vsel %vm553, %v555, %v551
        %v557 = vmul.f32 1.0, %v556
        %v558 = vrcp.pop %v466
        %v559 = vmul.f32 %v466, %v558
        %v560 = vsub.f32 1.0, %v559
        %v561 = vmul.f32 %v558, %v560
        %v562 = vadd.f32 %v558, %v561
        %vm563 = vweird.f32 %v466
        %vm564 = vweird.f32 %v558
        %vm565 = vmor %vm563, %vm564
        %v566 = vsel %vm565, %v558, %v562
        %v567 = vand.u32 2147483647, %v466
        %vm568 = vcmp.eq.f32.partialorder %v567, 8.507059e+37
        %v569 = vand.u32 %v466, 2147483648
        %v570 = vor.u32 1.1754944e-38, %v569
        %v571 = vsel %vm568, %v570, %v566
        %v572 = vmul.f32 1.0, %v571
        %v573 = vrcp.pop %v467
        %v574 = vmul.f32 %v467, %v573
        %v575 = vsub.f32 1.0, %v574
        %v576 = vmul.f32 %v573, %v575
        %v577 = vadd.f32 %v573, %v576
        %vm578 = vweird.f32 %v467
        %vm579 = vweird.f32 %v573
        %vm580 = vmor %vm578, %vm579
        %v581 = vsel %vm580, %v573, %v577
        %v582 = vand.u32 2147483647, %v467
        %vm583 = vcmp.eq.f32.partialorder %v582, 8.507059e+37
        %v584 = vand.u32 %v467, 2147483648
        %v585 = vor.u32 1.1754944e-38, %v584
        %v586 = vsel %vm583, %v585, %v581
        %v587 = vmul.f32 1.0, %v586
        %589 = vset.pattern.permute.xlu0 0
        %590 = vperm.xlu0 %589, %v482
        %v591 = vpop.permute.xlu0 %590
        %594 = vset.pattern.permute.xlu0 0
        %595 = vperm.xlu0 %594, %v497
        %v596 = vpop.permute.xlu0 %595
        %599 = vset.pattern.permute.xlu0 0
        %600 = vperm.xlu0 %599, %v512
        %v601 = vpop.permute.xlu0 %600
        %604 = vset.pattern.permute.xlu0 0
        %605 = vperm.xlu0 %604, %v527
        %v606 = vpop.permute.xlu0 %605
        %609 = vset.pattern.permute.xlu0 0
        %610 = vperm.xlu0 %609, %v542
        %v611 = vpop.permute.xlu0 %610
        %614 = vset.pattern.permute.xlu0 0
        %615 = vperm.xlu0 %614, %v557
        %v616 = vpop.permute.xlu0 %615
        %619 = vset.pattern.permute.xlu0 0
        %620 = vperm.xlu0 %619, %v572
        %v621 = vpop.permute.xlu0 %620
        %624 = vset.pattern.permute.xlu0 0
        %625 = vperm.xlu0 %624, %v587
        %v626 = vpop.permute.xlu0 %625
        %v628 = vmul.f32 %v245, %v591
        %v629 = vmul.f32 %v246, %v591
        %v630 = vmul.f32 %v247, %v591
        %v631 = vmul.f32 %v248, %v596
        %v632 = vmul.f32 %v249, %v596
        %v633 = vmul.f32 %v250, %v596
        %v634 = vmul.f32 %v251, %v601
        %v635 = vmul.f32 %v252, %v601
        %v636 = vmul.f32 %v253, %v601
        %v637 = vmul.f32 %v254, %v606
        %v638 = vmul.f32 %v255, %v606
        %v639 = vmul.f32 %v256, %v606
        %v640 = vmul.f32 %v257, %v611
        %v641 = vmul.f32 %v258, %v611
        %v642 = vmul.f32 %v259, %v611
        %v643 = vmul.f32 %v260, %v616
        %v644 = vmul.f32 %v261, %v616
        %v645 = vmul.f32 %v262, %v616
        %v646 = vmul.f32 %v263, %v621
        %v647 = vmul.f32 %v264, %v621
        %v648 = vmul.f32 %v265, %v621
        %v649 = vmul.f32 %v266, %v626
        %v650 = vmul.f32 %v267, %v626
        %v651 = vmul.f32 %v268, %v626
        %652 = vst [vmem:[%s244] sm:$0xff] %v628
        %653 = vst [vmem:[%s244 + $0x8] sm:$0xff] %v629
        %654 = vst.msk [vmem:[%s244 + $0x10] sm:$0xff] %vm270, %v630
        %655 = vst [vmem:[%s244 + $0x18] sm:$0xff] %v631
        %656 = vst [vmem:[%s244 + $0x20] sm:$0xff] %v632
        %657 = vst.msk [vmem:[%s244 + $0x28] sm:$0xff] %vm270, %v633
        %658 = vst [vmem:[%s244 + $0x30] sm:$0xff] %v634
        %659 = vst [vmem:[%s244 + $0x38] sm:$0xff] %v635
        %660 = vst.msk [vmem:[%s244 + $0x40] sm:$0xff] %vm270, %v636
        %661 = vst [vmem:[%s244 + $0x48] sm:$0xff] %v637
        %662 = vst [vmem:[%s244 + $0x50] sm:$0xff] %v638
        %663 = vst.msk [vmem:[%s244 + $0x58] sm:$0xff] %vm270, %v639
        %664 = vst [vmem:[%s244 + $0x60] sm:$0xff] %v640
        %665 = vst [vmem:[%s244 + $0x68] sm:$0xff] %v641
        %666 = vst.msk [vmem:[%s244 + $0x70] sm:$0xff] %vm270, %v642
        %667 = vst [vmem:[%s244 + $0x78] sm:$0xff] %v643
        %668 = vst [vmem:[%s244 + $0x80] sm:$0xff] %v644
        %669 = vst.msk [vmem:[%s244 + $0x88] sm:$0xff] %vm270, %v645
        %670 = vst [vmem:[%s244 + $0x90] sm:$0xff] %v646
        %671 = vst [vmem:[%s244 + $0x98] sm:$0xff] %v647
        %672 = vst.msk [vmem:[%s244 + $0xa0] sm:$0xff] %vm270, %v648
        %673 = vst [vmem:[%s244 + $0xa8] sm:$0xff] %v649
        %674 = vst [vmem:[%s244 + $0xb0] sm:$0xff] %v650
        %675 = vst.msk [vmem:[%s244 + $0xb8] sm:$0xff] %vm270, %v651
        %s676 = sand.u32 %s140, 1
        %s677 = scalar_lea.sflag [#allocation4], %s676
        %s678 = sand.u32 %s140, 1
        %s679 = smul.addr %s678, 192
        %s680 = scalar_lea.vmem [#allocation5], %s679
        // Predicated region
        $region45: #{tpu_custom_call.1} parent=39 // pred_check
          %p681 = pneg %p150
        $region46: #{tpu_custom_call.1} parent=39 // pred_check_branch
          %683 = sbr.rel (%p681) target = $region48
        $region47: #{tpu_custom_call.1} parent=39 // pred_region
          %685 = vsyncadd %s677, 0
          %s686 = smul.addr %s22, 24
          %s687 = smul.addr %s686, 8
          %s688 = scalar_lea.hbm %s5, %s687
          %s689 = sshll.u32 %s680, 4
          %s690 = int_to_ptr.vmem [resolvable:$true] %s689
          %s691 = sshll.u32 %s688, 4
          %s692 = int_to_ptr.hbm [resolvable:$true] %s691
          %697 = dma.vmem_to_hbm [thread:$0]  %s690, 3072, %s692, %s677, 384, 384, 24
        $region48: #{tpu_custom_call.1} parent=39 // pred_fallthru
          _
      $region40: #{tpu_custom_call.1} parent=5 // pred_fallthru
        _
      %p698 = scmp.le.s32.totalorder 2, %s17
      // Predicated region
      $region49: #{tpu_custom_call.1} parent=5 // pred_check
        %p699 = pneg %p698
      $region50: #{tpu_custom_call.1} parent=5 // pred_check_branch
        %701 = sbr.rel (%p699) target = $region52
      $region51: #{tpu_custom_call.1} parent=5 // pred_region
        %s702 = ssub.s32 %s17, 2
        // Predicated region
        $region53: #{tpu_custom_call.1} parent=51 // pred_check
          %p703 = pneg %p156
        $region54: #{tpu_custom_call.1} parent=51 // pred_check_branch
          %705 = sbr.rel (%p703) target = $region56
        $region55: #{tpu_custom_call.1} parent=51 // pred_region
          %s706 = sand.u32 %s141, 1
          %s707 = scalar_lea.sflag [#allocation4], %s706
          %s708 = sand.u32 %s141, 1
          %s709 = smul.addr %s708, 192
          %s710 = scalar_lea.vmem [#allocation5], %s709
          %712 = dma.done %s707, 3072
        $region56: #{tpu_custom_call.1} parent=51 // pred_fallthru
          _
      $region52: #{tpu_custom_call.1} parent=5 // pred_fallthru
        _
    $region6: #{tpu_custom_call.1} parent=1 // loop_footer
      %s21 = sadd.s32 1, %s17
    $region7: #{tpu_custom_call.1} parent=1 // loop_footer_branch
      %16 = sbr.rel target = $region3
    $region8: #{tpu_custom_call.1} parent=1 // loop_exit
      _
    %713 = vsyncpa [#allocation3], 1
    %s714 = scalar_lea.sflag [#allocation3], 1
    %715 = vsyncpa %s714, 1
    %716 = vsyncpa [#allocation4], 1
    %s717 = scalar_lea.sflag [#allocation4], 1
    %718 = vsyncpa %s717, 1

</llo_original>
